<compile_context>
chip_gen: v7x
topology: tpu7x:2x2x1
jax: 0.10.0
libtpu: 0.0.40
codegen_flags: <defaults>
</compile_context>

<pallas_src>
import jax
import jax.numpy as jnp
from jax.experimental import pallas as pl
from jax.experimental.pallas import tpu as pltpu

CTX_FEATURES = 4          # local_context width
IN_FEATURES = 5           # local_context (4) + steps_number (1)
HIDDEN = 32
NUM_ACTIONS = 4

DEFAULT_BLOCK_B = 1024    # batch tile on the lane axis; tiny VMEM footprint on all gens


def _round_up(n: int, m: int) -> int:
    return ((n + m - 1) // m) * m


def _mlp_kernel(lc_ref, st_ref, w1c_ref, w1s_ref, b1_ref, w2_ref, b2_ref, o_ref):
    """Transposed (feature-on-sublane, batch-on-lane) 2-layer MLP for one batch tile.

    lc_ref : (CTX_FEATURES, BT) bf16      st_ref : (1, BT) bf16
    w1c_ref: (HIDDEN, CTX_FEATURES) bf16  w1s_ref: (HIDDEN, 1) bf16
    b1_ref : (HIDDEN, 1) f32
    w2_ref : (NUM_ACTIONS, HIDDEN) f32    b2_ref : (NUM_ACTIONS, 1) f32
    o_ref  : (NUM_ACTIONS, BT) f32   (lane-dense output store)
    """
    # Layer 1: context part on the MXU (bf16 operands, f32 accumulation).
    h = jnp.dot(w1c_ref[...], lc_ref[...], preferred_element_type=jnp.float32)
    # Steps column is a rank-1 term: VPU broadcast-FMA instead of a K=1 MXU push.
    h = h + w1s_ref[...].astype(jnp.float32) * st_ref[...].astype(jnp.float32)
    h = jnp.maximum(h + b1_ref[...], 0.0)
    # Layer 2 (4x32, resident, f32) -> (NUM_ACTIONS, BT), lanes fully dense.
    o = jnp.dot(w2_ref[...], h, preferred_element_type=jnp.float32)
    o_ref[...] = (o + b2_ref[...]).astype(o_ref.dtype)


def maze_forward(local_context, steps_number, w1_t, b1_t, w2_t, b2_t,
                 block_b=DEFAULT_BLOCK_B):
    """Forward pass matching the MazeBaseModel train_model() input contract.

    local_context: (B, 4), steps_number: (B,) or (B, 1).  Returns logits (B, 4) f32.
    The concat/unsqueeze done by the training loop is fused into the kernel: the
    two raw tensors are streamed separately in bf16 and combined on-chip.
    """
    B = local_context.shape[0]
    assert local_context.shape[-1] == CTX_FEATURES, (
        f"Expected local_context features to be {CTX_FEATURES}, got {local_context.shape[-1]}")
    st = steps_number.reshape(B, 1)

    # Batch tile on the 128-lane axis; pad ragged B up to a tile multiple.
    bt = min(block_b, _round_up(max(B, 1), 128))
    b_pad = _round_up(max(B, 1), bt)
    pad = b_pad - B

    # Layout plumbing (done once, outside the kernel): batch on lanes, features on
    # sublanes, bf16 streaming dtype.  In a real pipeline the data producer would
    # emit these transposed bf16 slabs directly.
    lc_t = jnp.pad(local_context.astype(jnp.bfloat16), ((0, pad), (0, 0))).T  # (4, b_pad)
    st_t = jnp.pad(st.astype(jnp.bfloat16), ((0, pad), (0, 0))).T             # (1, b_pad)

    w1c_t = w1_t[:, :CTX_FEATURES]          # (HIDDEN, 4) bf16
    w1s_t = w1_t[:, CTX_FEATURES:]          # (HIDDEN, 1) bf16

    grid = (b_pad // bt,)

    def batch_spec(shape):
        return pl.BlockSpec(shape, lambda i: (0, i))

    def const_spec(shape):                  # weights stay resident across grid steps
        return pl.BlockSpec(shape, lambda i: (0, 0))

    out_t = pl.pallas_call(
        _mlp_kernel,
        out_shape=jax.ShapeDtypeStruct((NUM_ACTIONS, b_pad), jnp.float32),
        grid=grid,
        in_specs=[
            batch_spec((CTX_FEATURES, bt)),
            batch_spec((1, bt)),
            const_spec((HIDDEN, CTX_FEATURES)),
            const_spec((HIDDEN, 1)),
            const_spec((HIDDEN, 1)),
            const_spec((NUM_ACTIONS, HIDDEN)),
            const_spec((NUM_ACTIONS, 1)),
        ],
        out_specs=batch_spec((NUM_ACTIONS, bt)),
        compiler_params=pltpu.CompilerParams(
            dimension_semantics=("parallel",)),
    )(lc_t, st_t, w1c_t, w1s_t, b1_t, w2_t, b2_t)

    return out_t[:, :B].T                   # back to the PyTorch (B, NUM_ACTIONS) layout


def init_params(key):
    """PyTorch-Linear-like uniform init, stored pre-transposed (out, in) for the kernel."""
    k1, k2, k3, k4 = jax.random.split(key, 4)
    lim1 = 1.0 / (IN_FEATURES ** 0.5)
    lim2 = 1.0 / (HIDDEN ** 0.5)
    w1_t = jax.random.uniform(k1, (HIDDEN, IN_FEATURES), jnp.float32, -lim1, lim1)
    b1_t = jax.random.uniform(k2, (HIDDEN, 1), jnp.float32, -lim1, lim1)
    w2_t = jax.random.uniform(k3, (NUM_ACTIONS, HIDDEN), jnp.float32, -lim2, lim2)
    b2_t = jax.random.uniform(k4, (NUM_ACTIONS, 1), jnp.float32, -lim2, lim2)
    # First-layer weights stream/matmul in bf16 on the MXU; biases & layer 2 stay f32.
    return w1_t.astype(jnp.bfloat16), b1_t, w2_t, b2_t


if __name__ == "__main__":
    key = jax.random.PRNGKey(0)
    pkey, xkey1, xkey2 = jax.random.split(key, 3)
    w1_t, b1_t, w2_t, b2_t = init_params(pkey)

    B = 8
    # Mimic the training-loop inputs (pre-concat): local_context (B,4), steps (B,).
    local_context = jax.random.normal(xkey1, (B, CTX_FEATURES), jnp.float32)
    steps_number = jax.random.uniform(xkey2, (B,), jnp.float32, 0.0, 10.0)

    logits = maze_forward(local_context, steps_number, w1_t, b1_t, w2_t, b2_t)
    jax.block_until_ready(logits)

    # Plain-JAX reference using the same bf16-cast streaming inputs/weights.
    x = jnp.concatenate(
        [local_context.astype(jnp.bfloat16),
         steps_number.reshape(B, 1).astype(jnp.bfloat16)], axis=1).astype(jnp.float32)
    w1_f32 = w1_t.astype(jnp.float32).T            # (5, HIDDEN)
    h_ref = jnp.maximum(x @ w1_f32 + b1_t.T, 0.0)
    ref = h_ref @ w2_t.T + b2_t.T                  # (B, NUM_ACTIONS)

    assert logits.shape == (B, NUM_ACTIONS)
    assert jnp.allclose(logits, ref, atol=1e-3, rtol=1e-3), float(
        jnp.max(jnp.abs(logits - ref)))
    print("KERNEL_OK")
</pallas_src>

<mosaic_0001>
module attributes {stable_mosaic.version = 11 : i64} {
  func.func @_mlp_kernel(%arg0: i32, %arg1: memref<4x128xbf16, #tpu.memory_space<vmem>>, %arg2: memref<1x128xbf16, #tpu.memory_space<vmem>>, %arg3: memref<32x4xbf16, #tpu.memory_space<vmem>>, %arg4: memref<32x1xbf16, #tpu.memory_space<vmem>>, %arg5: memref<32x1xf32, #tpu.memory_space<vmem>>, %arg6: memref<4x32xf32, #tpu.memory_space<vmem>>, %arg7: memref<4x1xf32, #tpu.memory_space<vmem>>, %arg8: memref<4x128xf32, #tpu.memory_space<vmem>>) attributes {dimension_semantics = [#tpu.dimension_semantics<parallel>], iteration_bounds = array<i64: 1>, scalar_prefetch = 0 : i64, scratch_operands = 0 : i64, tpu.core_type = #tpu.core_type<tc>, window_params = [{transform_indices = @transform_0, window_bounds = array<i64: 4, 128>}, {transform_indices = @transform_1, window_bounds = array<i64: 1, 128>}, {pipeline_mode = #tpu.pipeline_mode<synchronous>, transform_indices = @transform_2, window_bounds = array<i64: 32, 4>}, {pipeline_mode = #tpu.pipeline_mode<synchronous>, transform_indices = @transform_3, window_bounds = array<i64: 32, 1>}, {pipeline_mode = #tpu.pipeline_mode<synchronous>, transform_indices = @transform_4, window_bounds = array<i64: 32, 1>}, {pipeline_mode = #tpu.pipeline_mode<synchronous>, transform_indices = @transform_5, window_bounds = array<i64: 4, 32>}, {pipeline_mode = #tpu.pipeline_mode<synchronous>, transform_indices = @transform_6, window_bounds = array<i64: 4, 1>}, {transform_indices = @transform_7, window_bounds = array<i64: 4, 128>}]} {
    %c0 = arith.constant 0 : index
    %c0_0 = arith.constant 0 : index
    %0 = vector.load %arg3[%c0, %c0_0] : memref<32x4xbf16, #tpu.memory_space<vmem>>, vector<32x4xbf16>
    %c0_1 = arith.constant 0 : index
    %c0_2 = arith.constant 0 : index
    %1 = vector.load %arg1[%c0_1, %c0_2] : memref<4x128xbf16, #tpu.memory_space<vmem>>, vector<4x128xbf16>
    %cst = arith.constant dense<0.000000e+00> : vector<32x128xf32>
    %2 = tpu.matmul %0, %1, %cst {dimension_numbers = #tpu.dot_dimension_numbers<[1], [0], [0], [1], [0, 0, 1, 1], [], []>} : vector<32x4xbf16>, vector<4x128xbf16>, vector<32x128xf32> -> vector<32x128xf32>
    %c0_3 = arith.constant 0 : index
    %c0_4 = arith.constant 0 : index
    %3 = vector.load %arg4[%c0_3, %c0_4] : memref<32x1xbf16, #tpu.memory_space<vmem>>, vector<32x1xbf16>
    %4 = arith.extf %3 : vector<32x1xbf16> to vector<32x1xf32>
    %c0_5 = arith.constant 0 : index
    %c0_6 = arith.constant 0 : index
    %5 = vector.load %arg2[%c0_5, %c0_6] : memref<1x128xbf16, #tpu.memory_space<vmem>>, vector<1x128xbf16>
    %6 = arith.extf %5 : vector<1x128xbf16> to vector<1x128xf32>
    %7 = vector.broadcast %4 : vector<32x1xf32> to vector<32x128xf32>
    %8 = vector.broadcast %6 : vector<1x128xf32> to vector<32x128xf32>
    %9 = arith.mulf %7, %8 : vector<32x128xf32>
    %10 = arith.addf %2, %9 : vector<32x128xf32>
    %c0_7 = arith.constant 0 : index
    %c0_8 = arith.constant 0 : index
    %11 = vector.load %arg5[%c0_7, %c0_8] : memref<32x1xf32, #tpu.memory_space<vmem>>, vector<32x1xf32>
    %12 = vector.broadcast %11 : vector<32x1xf32> to vector<32x128xf32>
    %13 = arith.addf %10, %12 : vector<32x128xf32>
    %cst_9 = arith.constant 0.000000e+00 : f32
    %14 = vector.broadcast %cst_9 : f32 to vector<32x128xf32>
    %15 = arith.maximumf %13, %14 : vector<32x128xf32>
    %c0_10 = arith.constant 0 : index
    %c0_11 = arith.constant 0 : index
    %16 = vector.load %arg6[%c0_10, %c0_11] : memref<4x32xf32, #tpu.memory_space<vmem>>, vector<4x32xf32>
    %cst_12 = arith.constant dense<0.000000e+00> : vector<4x128xf32>
    %17 = tpu.matmul %16, %15, %cst_12 {dimension_numbers = #tpu.dot_dimension_numbers<[1], [0], [0], [1], [0, 0, 1, 1], [], []>} : vector<4x32xf32>, vector<32x128xf32>, vector<4x128xf32> -> vector<4x128xf32>
    %c0_13 = arith.constant 0 : index
    %c0_14 = arith.constant 0 : index
    %18 = vector.load %arg7[%c0_13, %c0_14] : memref<4x1xf32, #tpu.memory_space<vmem>>, vector<4x1xf32>
    %19 = vector.broadcast %18 : vector<4x1xf32> to vector<4x128xf32>
    %20 = arith.addf %17, %19 : vector<4x128xf32>
    %c0_15 = arith.constant 0 : index
    %c0_16 = arith.constant 0 : index
    %21 = vector.load %arg8[%c0_15, %c0_16] : memref<4x128xf32, #tpu.memory_space<vmem>>, vector<4x128xf32>
    tpu.vector_store %arg8[%c0_15, %c0_16], %20 {strides = array<i32>} : memref<4x128xf32, #tpu.memory_space<vmem>>, vector<4x128xf32>,
    return
  }
  func.func @transform_0(%arg0: i32) -> (i32, i32) {
    %c0_i32 = arith.constant 0 : i32
    %c0_i32_0 = arith.constant 0 : i32
    return %c0_i32, %arg0 : i32, i32
  }
  func.func @transform_1(%arg0: i32) -> (i32, i32) {
    %c0_i32 = arith.constant 0 : i32
    %c0_i32_0 = arith.constant 0 : i32
    return %c0_i32, %arg0 : i32, i32
  }
  func.func @transform_2(%arg0: i32) -> (i32, i32) {
    %c0_i32 = arith.constant 0 : i32
    %c0_i32_0 = arith.constant 0 : i32
    %c0_i32_1 = arith.constant 0 : i32
    return %c0_i32, %c0_i32_0 : i32, i32
  }
  func.func @transform_3(%arg0: i32) -> (i32, i32) {
    %c0_i32 = arith.constant 0 : i32
    %c0_i32_0 = arith.constant 0 : i32
    %c0_i32_1 = arith.constant 0 : i32
    return %c0_i32, %c0_i32_0 : i32, i32
  }
  func.func @transform_4(%arg0: i32) -> (i32, i32) {
    %c0_i32 = arith.constant 0 : i32
    %c0_i32_0 = arith.constant 0 : i32
    %c0_i32_1 = arith.constant 0 : i32
    return %c0_i32, %c0_i32_0 : i32, i32
  }
  func.func @transform_5(%arg0: i32) -> (i32, i32) {
    %c0_i32 = arith.constant 0 : i32
    %c0_i32_0 = arith.constant 0 : i32
    %c0_i32_1 = arith.constant 0 : i32
    return %c0_i32, %c0_i32_0 : i32, i32
  }
  func.func @transform_6(%arg0: i32) -> (i32, i32) {
    %c0_i32 = arith.constant 0 : i32
    %c0_i32_0 = arith.constant 0 : i32
    %c0_i32_1 = arith.constant 0 : i32
    return %c0_i32, %c0_i32_0 : i32, i32
  }
  func.func @transform_7(%arg0: i32) -> (i32, i32) {
    %c0_i32 = arith.constant 0 : i32
    %c0_i32_0 = arith.constant 0 : i32
    return %c0_i32, %arg0 : i32, i32
  }
}

</mosaic_0001>

<llo_original>
// kernel: tpu_custom_call.1
$region0: #{tpu_custom_call.1}
  #allocation0 [shape = 'u32[]', space=smem, size = 0x4, offset = 0x4, fixed_abs, tag = 'smem constant byte address 0x4 - core index']
  #allocation1 [shape = 'u32[144,128]{1,0:T(1,128)}', space=vmem, size = 0x12000, scoped, tag = 'internal scratch']
  %s0 = inlined_call_operand.vmem [shape: bf16[4,128], index: 0, kind: input, shape index: {}]
  %s1 = inlined_call_operand.vmem [shape: bf16[1,128], index: 1, kind: input, shape index: {}]
  %s2 = inlined_call_operand.vmem [shape: bf16[32,4], index: 2, kind: input, shape index: {}]
  %s3 = inlined_call_operand.vmem [shape: bf16[32,1], index: 3, kind: input, shape index: {}]
  %s4 = inlined_call_operand.vmem [shape: f32[32,1], index: 4, kind: input, shape index: {}]
  %s5 = inlined_call_operand.vmem [shape: f32[4,32], index: 5, kind: input, shape index: {}]
  %s6 = inlined_call_operand.vmem [shape: f32[4,1], index: 6, kind: input, shape index: {}]
  %s7 = inlined_call_operand.hbm [shape: f32[4,128], index: 7, kind: output, shape index: {}]
  %s8 = sld [smem:[#allocation0]]
  $region38: #{tpu_custom_call.1} parent=0
    _
  %s10 = ssub.s32 1, %s8
  %s11 = scalar_select 0, %s10, %s8
  $region1: #{tpu_custom_call.1} parent=0
    #allocation2 [shape = 'u8[2048]{0}', space=vmem, size = 0x800, scoped, tag = 'output window, operand 0, single buffered']
    #allocation3 [shape = 's32[1]{0}', space=sflag, size = 0x4, scoped, tag = 'scoped memory for tpu_custom_call.1']
    %12 = vsyncpa [#allocation3], 0
    // Predicated region
    $region2: #{tpu_custom_call.1} parent=1 // pred_check
      _
    $region3: #{tpu_custom_call.1} parent=1 // pred_check_branch
      %14 = sbr.rel (0) target = $region5
    $region4: #{tpu_custom_call.1} parent=1 // pred_region
      _
    $region5: #{tpu_custom_call.1} parent=1 // pred_fallthru
      _
    // Predicated region
    $region6: #{tpu_custom_call.1} parent=1 // pred_check
      _
    $region7: #{tpu_custom_call.1} parent=1 // pred_check_branch
      %16 = sbr.rel (0) target = $region9
    $region8: #{tpu_custom_call.1} parent=1 // pred_region
      _
    $region9: #{tpu_custom_call.1} parent=1 // pred_fallthru
      _
    // Predicated region
    $region10: #{tpu_custom_call.1} parent=1 // pred_check
      _
    $region11: #{tpu_custom_call.1} parent=1 // pred_check_branch
      %18 = sbr.rel (0) target = $region13
    $region12: #{tpu_custom_call.1} parent=1 // pred_region
      _
    $region13: #{tpu_custom_call.1} parent=1 // pred_fallthru
      _
    // Predicated region
    $region14: #{tpu_custom_call.1} parent=1 // pred_check
      _
    $region15: #{tpu_custom_call.1} parent=1 // pred_check_branch
      %20 = sbr.rel (0) target = $region17
    $region16: #{tpu_custom_call.1} parent=1 // pred_region
      _
    $region17: #{tpu_custom_call.1} parent=1 // pred_fallthru
      _
    // Predicated region
    $region18: #{tpu_custom_call.1} parent=1 // pred_check
      _
    $region19: #{tpu_custom_call.1} parent=1 // pred_check_branch
      %22 = sbr.rel (0) target = $region21
    $region20: #{tpu_custom_call.1} parent=1 // pred_region
      _
    $region21: #{tpu_custom_call.1} parent=1 // pred_fallthru
      _
    // Predicated region
    $region22: #{tpu_custom_call.1} parent=1 // pred_check
      _
    $region23: #{tpu_custom_call.1} parent=1 // pred_check_branch
      %24 = sbr.rel (0) target = $region25
    $region24: #{tpu_custom_call.1} parent=1 // pred_region
      _
    $region25: #{tpu_custom_call.1} parent=1 // pred_fallthru
      _
    // Predicated region
    $region26: #{tpu_custom_call.1} parent=1 // pred_check
      _
    $region27: #{tpu_custom_call.1} parent=1 // pred_check_branch
      %26 = sbr.rel (0) target = $region29
    $region28: #{tpu_custom_call.1} parent=1 // pred_region
      _
    $region29: #{tpu_custom_call.1} parent=1 // pred_fallthru
      _
    %v28 = vld [vmem:[%s2] sm:$0xf]
    %v29 = vld [vmem:[%s2 + $0x4] sm:$0xf]
    %v30 = vld [vmem:[%s2 + $0x8] sm:$0xf]
    %v31 = vld [vmem:[%s2 + $0xc] sm:$0xf]
    %v32 = vld [vmem:[%s0] sm:$0x3]
    %v33 = vld [vmem:[%s3] sm:$0xf]
    %v34 = vld [vmem:[%s3 + $0x4] sm:$0xf]
    %v35 = vld [vmem:[%s3 + $0x8] sm:$0xf]
    %v36 = vld [vmem:[%s3 + $0xc] sm:$0xf]
    %v37 = vunpack.c.l.bf16 %v33
    %v38 = vunpack.c.l.bf16 %v34
    %v39 = vunpack.c.l.bf16 %v35
    %v40 = vunpack.c.l.bf16 %v36
    %v41 = vld [vmem:[%s1] sm:$0x1]
    %v42 = vunpack.c.l.bf16 %v41
    %44 = vset.pattern.permute.xlu0 0
    %45 = vperm.xlu0 %44, %v37
    %v46 = vpop.permute.xlu0 %45
    %49 = vset.pattern.permute.xlu0 0
    %50 = vperm.xlu0 %49, %v38
    %v51 = vpop.permute.xlu0 %50
    %54 = vset.pattern.permute.xlu0 0
    %55 = vperm.xlu0 %54, %v39
    %v56 = vpop.permute.xlu0 %55
    %59 = vset.pattern.permute.xlu0 0
    %60 = vperm.xlu0 %59, %v40
    %v61 = vpop.permute.xlu0 %60
    %v63 = vlaneseq
    %v64 = vshrl.u32 %v63, 7
    %v65 = vsub.s32 0, %v64
    %v66 = vrot.slane %v42, %v65
    %v67 = vmul.f32 %v46, %v66
    %v68 = vmul.f32 %v51, %v66
    %v69 = vmul.f32 %v56, %v66
    %v70 = vmul.f32 %v61, %v66
    %v75 = vunpack.c.l.b16 %v28
    %v76 = vunpack.c.l.b16 %v29
    %v77 = vunpack.c.l.b16 %v30
    %v78 = vunpack.c.l.b16 %v31
    %v79 = vpack.c.b16 %v76, %v75
    %v80 = vpack.c.b16 %v78, %v77
    %vm81 = vcmask 31744
    %v83 = vsel %vm81, %v79, 0
    %v86 = vsel %vm81, %v80, 0
    %vm88 = vcmask 1041408
    %v90 = vsel %vm88, %v32, 0
    %92 = vmatprep.subr.bf16.mxu0 0
    %93 = vmatpush1.bf16.msra.mxu0 %v90
    %94 = vmatprep.subr.bf16.mxu0 0
    %95 = vmatpush1.bf16.msra.mxu0 0
    %96 = vmatprep.subr.bf16.mxu0 0
    %97 = vmatpush1.bf16.msra.mxu0 0
    %98 = vmatprep.subr.bf16.mxu0 0
    %99 = vmatpush1.bf16.msra.mxu0 0
    %100 = vmatprep.subr.bf16.mxu0 0
    %101 = vmatpush1.bf16.msra.mxu0 0
    %102 = vmatprep.subr.bf16.mxu0 0
    %103 = vmatpush1.bf16.msra.mxu0 0
    %104 = vmatprep.subr.bf16.mxu0 0
    %105 = vmatpush1.bf16.msra.mxu0 0
    %106 = vmatprep.subr.bf16.mxu0 0
    %107 = vmatpush1.bf16.msra.mxu0 0
    %108 = vmatprep.subr.bf16.mxu0 0
    %109 = vmatpush1.bf16.msra.mxu0 0
    %110 = vmatprep.subr.bf16.mxu0 0
    %111 = vmatpush1.bf16.msra.mxu0 0
    %112 = vmatprep.subr.bf16.mxu0 0
    %113 = vmatpush1.bf16.msra.mxu0 0
    %114 = vmatprep.subr.bf16.mxu0 0
    %115 = vmatpush1.bf16.msra.mxu0 0
    %116 = vmatprep.subr.bf16.mxu0 0
    %117 = vmatpush1.bf16.msra.mxu0 0
    %118 = vmatprep.subr.bf16.mxu0 0
    %119 = vmatpush1.bf16.msra.mxu0 0
    %120 = vmatprep.subr.bf16.mxu0 0
    %121 = vmatpush1.bf16.msra.mxu0 0
    %122 = vmatprep.subr.bf16.mxu0 0
    %123 = vmatpush1.bf16.msra.mxu0 0
    %124 = vmatprep.mubr.bf16.mxu0 0
    %125 = vmatmul.mubr.bf16.gmra.mrb[0].mxu0 %v83
    %v126 = vpop.f32.mrb[0].mxu0
    %v127 = vadd.f32 %v67, %v126
    %v128 = vpop.f32.mrb[0].mxu0
    %v129 = vpop.f32.mrb[0].mxu0
    %v130 = vadd.f32 %v68, %v129
    %v131 = vpop.f32.mrb[0].mxu0
    %132 = vmatprep.mubr.bf16.mxu0 0
    %133 = vmatmul.mubr.bf16.gmra.mrb[0].mxu0 %v86
    %v134 = vpop.f32.mrb[0].mxu0
    %v135 = vadd.f32 %v69, %v134
    %v136 = vpop.f32.mrb[0].mxu0
    %v137 = vpop.f32.mrb[0].mxu0
    %v138 = vadd.f32 %v70, %v137
    %v139 = vpop.f32.mrb[0].mxu0
    %140 = vdwg.mxu0
    %v141 = vld [vmem:[%s4] sm:$0xff]
    %v142 = vld [vmem:[%s4 + $0x8] sm:$0xff]
    %v143 = vld [vmem:[%s4 + $0x10] sm:$0xff]
    %v144 = vld [vmem:[%s4 + $0x18] sm:$0xff]
    %146 = vset.pattern.permute.xlu0 0
    %147 = vperm.xlu0 %146, %v141
    %v148 = vpop.permute.xlu0 %147
    %151 = vset.pattern.permute.xlu0 0
    %152 = vperm.xlu0 %151, %v142
    %v153 = vpop.permute.xlu0 %152
    %156 = vset.pattern.permute.xlu0 0
    %157 = vperm.xlu0 %156, %v143
    %v158 = vpop.permute.xlu0 %157
    %161 = vset.pattern.permute.xlu0 0
    %162 = vperm.xlu0 %161, %v144
    %v163 = vpop.permute.xlu0 %162
    %v165 = vadd.f32 %v127, %v148
    %v166 = vadd.f32 %v130, %v153
    %v167 = vadd.f32 %v135, %v158
    %v168 = vadd.f32 %v138, %v163
    %v169 = vmax.f32 %v165, 0.0
    %v170 = vmax.f32 %v166, 0.0
    %v171 = vmax.f32 %v167, 0.0
    %v172 = vmax.f32 %v168, 0.0
    %v173 = vld [vmem:[%s5] sm:$0xf]
    %v174 = vld [vmem:[%s6] sm:$0xf]
    %176 = vset.pattern.permute.xlu0 0
    %177 = vperm.xlu0 %176, %v174
    %v178 = vpop.permute.xlu0 %177
    %vm180 = vcmask 261120
    %v182 = vsel %vm180, %v173, 0
    %184 = vmatprep.subr.mxu0 0.0
    %185 = vmatpush1.msra.mxu0 %v169
    %186 = vmatprep.subr.mxu0 0.0
    %187 = vmatpush1.msra.mxu0 %v170
    %188 = vmatprep.subr.mxu0 0.0
    %189 = vmatpush1.msra.mxu0 %v171
    %190 = vmatprep.subr.mxu0 0.0
    %191 = vmatpush1.msra.mxu0 %v172
    %192 = vmatprep.subr.mxu0 0.0
    %193 = vmatpush1.msra.mxu0 0.0
    %194 = vmatprep.subr.mxu0 0.0
    %195 = vmatpush1.msra.mxu0 0.0
    %196 = vmatprep.subr.mxu0 0.0
    %197 = vmatpush1.msra.mxu0 0.0
    %198 = vmatprep.subr.mxu0 0.0
    %199 = vmatpush1.msra.mxu0 0.0
    %200 = vmatprep.subr.mxu0 0.0
    %201 = vmatpush1.msra.mxu0 0.0
    %202 = vmatprep.subr.mxu0 0.0
    %203 = vmatpush1.msra.mxu0 0.0
    %204 = vmatprep.subr.mxu0 0.0
    %205 = vmatpush1.msra.mxu0 0.0
    %206 = vmatprep.subr.mxu0 0.0
    %207 = vmatpush1.msra.mxu0 0.0
    %208 = vmatprep.subr.mxu0 0.0
    %209 = vmatpush1.msra.mxu0 0.0
    %210 = vmatprep.subr.mxu0 0.0
    %211 = vmatpush1.msra.mxu0 0.0
    %212 = vmatprep.subr.mxu0 0.0
    %213 = vmatpush1.msra.mxu0 0.0
    %214 = vmatprep.subr.mxu0 0.0
    %215 = vmatpush1.msra.mxu0 0.0
    %216 = vmatprep.subr.mxu0 0.0
    %217 = vmatpush1.msra.mxu0 0.0
    %218 = vmatprep.subr.mxu0 0.0
    %219 = vmatpush1.msra.mxu0 0.0
    %220 = vmatprep.subr.mxu0 0.0
    %221 = vmatpush1.msra.mxu0 0.0
    %222 = vmatprep.subr.mxu0 0.0
    %223 = vmatpush1.msra.mxu0 0.0
    %224 = vmatprep.subr.mxu0 0.0
    %225 = vmatpush1.msra.mxu0 0.0
    %226 = vmatprep.subr.mxu0 0.0
    %227 = vmatpush1.msra.mxu0 0.0
    %228 = vmatprep.subr.mxu0 0.0
    %229 = vmatpush1.msra.mxu0 0.0
    %230 = vmatprep.subr.mxu0 0.0
    %231 = vmatpush1.msra.mxu0 0.0
    %232 = vmatprep.subr.mxu0 0.0
    %233 = vmatpush1.msra.mxu0 0.0
    %234 = vmatprep.subr.mxu0 0.0
    %235 = vmatpush1.msra.mxu0 0.0
    %236 = vmatprep.subr.mxu0 0.0
    %237 = vmatpush1.msra.mxu0 0.0
    %238 = vmatprep.subr.mxu0 0.0
    %239 = vmatpush1.msra.mxu0 0.0
    %240 = vmatprep.subr.mxu0 0.0
    %241 = vmatpush1.msra.mxu0 0.0
    %242 = vmatprep.subr.mxu0 0.0
    %243 = vmatpush1.msra.mxu0 0.0
    %244 = vmatprep.subr.mxu0 0.0
    %245 = vmatpush1.msra.mxu0 0.0
    %246 = vmatprep.subr.mxu0 0.0
    %247 = vmatpush1.msra.mxu0 0.0
    %248 = vmatprep.mubr.f32.mxu0 0.0
    %249 = vmatmul.mubr.f32.gmra.mrb[0].mxu0 %v182
    %v250 = vpop.f32.mrb[0].mxu0
    %v251 = vadd.f32 %v178, %v250
    %v252 = vpop.f32.mrb[0].mxu0
    %253 = vdwg.mxu0
    %254 = vst [vmem:[#allocation2] sm:$0xf] %v251
    // Predicated region
    $region30: #{tpu_custom_call.1} parent=1 // pred_check
      _
    $region31: #{tpu_custom_call.1} parent=1 // pred_check_branch
      %256 = sbr.rel (0) target = $region33
    $region32: #{tpu_custom_call.1} parent=1 // pred_region
      %s258 = ssub.s32 64, 64
      %259 = vsyncadd [#allocation3], %s258
      %s261 = sshll.u32 [#allocation2], 4
      %s262 = int_to_ptr.vmem [resolvable:$true] %s261
      %264 = dma.vmem_to_hbm [thread:$0]  %s262, 64, %s7, [#allocation3]
    $region33: #{tpu_custom_call.1} parent=1 // pred_fallthru
      _
    // Predicated region
    $region34: #{tpu_custom_call.1} parent=1 // pred_check
      _
    $region35: #{tpu_custom_call.1} parent=1 // pred_check_branch
      %266 = sbr.rel (0) target = $region37
    $region36: #{tpu_custom_call.1} parent=1 // pred_region
      %267 = dma.done [#allocation3], 64
    $region37: #{tpu_custom_call.1} parent=1 // pred_fallthru
      _
    %268 = vsyncpa [#allocation3], 1

</llo_original>
